<compile_context>
chip_gen: v5e
topology: v5e:2x2
jax: 0.10.0
libtpu: 0.0.40
codegen_flags: <defaults>
</compile_context>

<pallas_src>
import functools

import jax
import jax.numpy as jnp
from jax.experimental import pallas as pl
from jax.experimental.pallas import tpu as pltpu


def _round_up(n, m):
    return ((n + m - 1) // m) * m


def _pad_dim(n):
    """Lane-pad: 128 granularity, 256 once the logical dim is already >=256."""
    g = 256 if n >= 256 else 128
    return _round_up(n, g)


def _pick_row_tile(total_rows, target=256):
    """Largest divisor of total_rows that is <= target and a multiple of 8,
    preferring >= 2 reduction steps; falls back to the full extent."""
    best = None
    for tr in range(min(total_rows, target), 0, -1):
        if total_rows % tr == 0 and tr % 8 == 0:
            best = tr
            break
    if best is None:
        return total_rows                       # single step, block == full dim
    if best == total_rows and total_rows % 2 == 0 and (total_rows // 2) % 8 == 0:
        best = total_rows // 2                  # prefer >= 2 reduction steps
    return best


# ---------------------------------------------------------------------------
# Kernel 1: im2col-matmul conv3x3 + bias + ReLU + global-average-pool
# ---------------------------------------------------------------------------
def conv_pool_kernel(p_ref, wc_ref, bc_ref, pooled_ref, *, inv_hw):
    # p_ref      : (1, TR, Kp)  bf16  lane-dense im2col patch rows
    # wc_ref     : (Kp, Cp)     bf16  im2col conv weight (zero-padded)
    # bc_ref     : (1, Cp)      f32   conv bias          (zero-padded)
    # pooled_ref : (1, 1, Cp)   f32   pooled mean (accumulated across r steps)
    r = pl.program_id(1)

    @pl.when(r == 0)
    def _():
        pooled_ref[...] = jnp.zeros_like(pooled_ref)

    # Single MXU matmul (bf16 in, f32 accumulate) + bias + ReLU.
    conv = jnp.dot(p_ref[0], wc_ref[...], preferred_element_type=jnp.float32)
    conv = jnp.maximum(conv + bc_ref[...], 0.0)            # (TR, Cp) f32

    # Partial global-average-pool: running per-channel sum in the resident
    # output block (index constant over r -> stays in VMEM).
    pooled_ref[0] += jnp.sum(conv, axis=0, keepdims=True)

    @pl.when(r == pl.num_programs(1) - 1)
    def _():
        pooled_ref[...] = pooled_ref[...] * inv_hw         # sum -> mean


# ---------------------------------------------------------------------------
# Kernel 2: batched fc_cls + L2 normalization (tiny head)
# ---------------------------------------------------------------------------
def head_kernel(pooled_ref, wf_ref, bf_ref, o_ref, cls_ref):
    # pooled_ref : (B, Cp)  f32   pooled descriptors (padded chans are zero)
    # wf_ref     : (Cp, Np) bf16  fc weight (zero-padded)
    # bf_ref     : (1, Np)  f32   fc bias   (zero-padded)
    pooled = pooled_ref[...]
    cls_ref[...] = (jnp.dot(pooled.astype(jnp.bfloat16), wf_ref[...],
                            preferred_element_type=jnp.float32)
                    + bf_ref[...])
    # L2N: x / (||x|| + 1e-6), matching the PyTorch module's eps placement.
    nrm = jnp.sqrt(jnp.sum(pooled * pooled, axis=-1, keepdims=True)) + 1e-6
    o_ref[...] = pooled / nrm


# ---------------------------------------------------------------------------
# Wrapper: NCHW in, (o, cls) out   (PyTorch-facing)
# ---------------------------------------------------------------------------
def image_retrieval_forward(x_nchw, params):
    conv_w = params["conv_w"]          # (3, 3, Cin, Cout)  HWIO, f32
    conv_b = params["conv_b"]          # (1, Cout)          f32
    fc_w = params["fc_w"]              # (Cout, NCLS)       f32
    fc_b = params["fc_b"]              # (1, NCLS)          f32

    B, Cin, H, W = x_nchw.shape
    Cout = conv_w.shape[-1]
    N = fc_w.shape[-1]
    K = 9 * Cin
    Kp = _pad_dim(K)
    Cp = _pad_dim(Cout)
    Np = _pad_dim(N)
    HW = H * W

    # --- wrapper-side im2col: fold the 3x3 taps into the channel dim so the
    #     kernel sees a lane-dense (.., Kp=128) last axis instead of Cin=4.
    #     Tap order (kh, kw, cin) matches conv_w.reshape(9*Cin, Cout). --------
    x_nhwc = jnp.transpose(x_nchw, (0, 2, 3, 1))
    x_halo = jnp.pad(x_nhwc, ((0, 0), (1, 1), (1, 1), (0, 0)))
    taps = [x_halo[:, kh:kh + H, kw:kw + W, :]
            for kh in range(3) for kw in range(3)]
    patches = jnp.concatenate(taps, axis=-1).reshape(B, HW, K)
    patches = jnp.pad(patches, ((0, 0), (0, 0), (0, Kp - K))).astype(jnp.bfloat16)

    # Zero-padded, lane-dense weights / biases (padded entries stay zero so
    # pooling, L2N and logits are unaffected).
    wc = jnp.pad(conv_w.reshape(K, Cout),
                 ((0, Kp - K), (0, Cp - Cout))).astype(jnp.bfloat16)
    bc = jnp.pad(conv_b, ((0, 0), (0, Cp - Cout))).astype(jnp.float32)
    wf = jnp.pad(fc_w, ((0, Cp - Cout), (0, Np - N))).astype(jnp.bfloat16)
    bf = jnp.pad(fc_b, ((0, 0), (0, Np - N))).astype(jnp.float32)

    TR = _pick_row_tile(HW)
    n_r = HW // TR

    # --- kernel 1: conv + ReLU + global average pool ------------------------
    pooled = pl.pallas_call(
        functools.partial(conv_pool_kernel, inv_hw=1.0 / float(HW)),
        out_shape=jax.ShapeDtypeStruct((B, 1, Cp), jnp.float32),
        grid_spec=pltpu.PrefetchScalarGridSpec(
            num_scalar_prefetch=0,
            grid=(B, n_r),
            in_specs=[
                pl.BlockSpec((1, TR, Kp), lambda b, r: (b, r, 0)),
                pl.BlockSpec((Kp, Cp), lambda b, r: (0, 0)),
                pl.BlockSpec((1, Cp), lambda b, r: (0, 0)),
            ],
            out_specs=pl.BlockSpec((1, 1, Cp), lambda b, r: (b, 0, 0)),
        ),
        compiler_params=pltpu.CompilerParams(
            dimension_semantics=("parallel", "arbitrary")),
    )(patches, wc, bc)

    pooled = pooled[:, 0, :]                               # (B, Cp)

    # --- kernel 2: batched fc_cls + L2N --------------------------------------
    o_pad, cls_pad = pl.pallas_call(
        head_kernel,
        out_shape=(jax.ShapeDtypeStruct((B, Cp), jnp.float32),
                   jax.ShapeDtypeStruct((B, Np), jnp.float32)),
        grid_spec=pltpu.PrefetchScalarGridSpec(
            num_scalar_prefetch=0,
            grid=(1,),
            in_specs=[
                pl.BlockSpec((B, Cp), lambda i: (0, 0)),
                pl.BlockSpec((Cp, Np), lambda i: (0, 0)),
                pl.BlockSpec((1, Np), lambda i: (0, 0)),
            ],
            out_specs=(pl.BlockSpec((B, Cp), lambda i: (0, 0)),
                       pl.BlockSpec((B, Np), lambda i: (0, 0))),
        ),
    )(pooled, wf, bf)

    # Slice the logical channels back off the lane-padded outputs.
    return o_pad[:, :Cout], cls_pad[:, :N]


# ---------------------------------------------------------------------------
# Plain-JAX reference (mirrors the kernel's bf16-in / f32-accumulate matmuls;
# the 2e-3 tolerance below is intentional and covers this bf16 quantization).
# ---------------------------------------------------------------------------
def reference_forward(x_nchw, params):
    x = jnp.transpose(x_nchw, (0, 2, 3, 1)).astype(jnp.bfloat16)
    w = params["conv_w"].astype(jnp.bfloat16)
    feats = jax.lax.conv_general_dilated(
        x, w, window_strides=(1, 1), padding="SAME",
        dimension_numbers=("NHWC", "HWIO", "NHWC"),
        preferred_element_type=jnp.float32)
    feats = jnp.maximum(feats + params["conv_b"][0], 0.0)
    pooled = jnp.mean(feats, axis=(1, 2))
    cls = jnp.dot(pooled.astype(jnp.bfloat16),
                  params["fc_w"].astype(jnp.bfloat16),
                  preferred_element_type=jnp.float32) + params["fc_b"][0]
    o = pooled / (jnp.linalg.norm(pooled, axis=-1, keepdims=True) + 1e-6)
    return o, cls


if __name__ == "__main__":
    # Small shapes consistent with the module's forward:
    B, Cin, HW = 2, 4, 16          # input  (B, Cin, H, W)
    Cmid = 32                      # backbone output channels
    NCLS = 8                       # fc_cls output classes

    key = jax.random.PRNGKey(0)
    k_x, k_cw, k_cb, k_fw, k_fb = jax.random.split(key, 5)

    x = jax.random.normal(k_x, (B, Cin, HW, HW), dtype=jnp.float32)

    # Deterministic parameter init (PyTorch shapes, transposed to TPU layout):
    #   Conv2d weight (Cout, Cin, 3, 3) -> HWIO (3, 3, Cin, Cout)
    #   Linear weight (NCLS, Cmid)      -> (Cmid, NCLS)
    conv_w_pt = jax.random.normal(k_cw, (Cmid, Cin, 3, 3), jnp.float32) * 0.1
    conv_w = jnp.transpose(conv_w_pt, (2, 3, 1, 0))
    conv_b = (jax.random.normal(k_cb, (Cmid,), jnp.float32) * 0.01).reshape(1, Cmid)
    fc_w_pt = jax.random.normal(k_fw, (NCLS, Cmid), jnp.float32) * 0.1
    fc_w = jnp.transpose(fc_w_pt, (1, 0))
    fc_b = (jax.random.normal(k_fb, (NCLS,), jnp.float32) * 0.01).reshape(1, NCLS)

    params = {"conv_w": conv_w, "conv_b": conv_b, "fc_w": fc_w, "fc_b": fc_b}

    fwd = jax.jit(image_retrieval_forward)
    o_norm, cls = fwd(x, params)
    jax.block_until_ready((o_norm, cls))

    o_ref, cls_ref = reference_forward(x, params)
    assert o_norm.shape == (B, Cmid) and cls.shape == (B, NCLS)
    assert jnp.allclose(o_norm, o_ref, atol=2e-3, rtol=2e-3), (
        float(jnp.max(jnp.abs(o_norm - o_ref))))
    assert jnp.allclose(cls, cls_ref, atol=2e-3, rtol=2e-3), (
        float(jnp.max(jnp.abs(cls - cls_ref))))

    print("KERNEL_OK")
</pallas_src>

<mosaic_0001>
module attributes {stable_mosaic.version = 11 : i64} {
  func.func @conv_pool_kernel(%arg0: i32, %arg1: i32, %arg2: memref<1x128x128xbf16, #tpu.memory_space<vmem>>, %arg3: memref<128x128xbf16, #tpu.memory_space<vmem>>, %arg4: memref<1x128xf32, #tpu.memory_space<vmem>>, %arg5: memref<1x1x128xf32, #tpu.memory_space<vmem>>) attributes {dimension_semantics = [#tpu.dimension_semantics<parallel>, #tpu.dimension_semantics<arbitrary>], iteration_bounds = array<i64: 2, 2>, scalar_prefetch = 0 : i64, scratch_operands = 0 : i64, tpu.core_type = #tpu.core_type<tc>, window_params = [{transform_indices = @transform_0, window_bounds = array<i64: 1, 128, 128>}, {pipeline_mode = #tpu.pipeline_mode<synchronous>, transform_indices = @transform_1, window_bounds = array<i64: 128, 128>}, {pipeline_mode = #tpu.pipeline_mode<synchronous>, transform_indices = @transform_2, window_bounds = array<i64: 1, 128>}, {transform_indices = @transform_3, window_bounds = array<i64: 1, 1, 128>}]} {
    %c0_i32 = arith.constant 0 : i32
    %0 = arith.cmpi eq, %arg1, %c0_i32 : i32
    %1 = arith.extui %0 : i1 to i32
    %c0_i32_0 = arith.constant 0 : i32
    %2 = arith.cmpi ne, %1, %c0_i32_0 : i32
    scf.if %2 {
      %cst_16 = arith.constant 0.000000e+00 : f32
      %23 = vector.broadcast %cst_16 : f32 to vector<1x1x128xf32>
      %c0_17 = arith.constant 0 : index
      %c0_18 = arith.constant 0 : index
      %c0_19 = arith.constant 0 : index
      %24 = vector.load %arg5[%c0_17, %c0_18, %c0_19] : memref<1x1x128xf32, #tpu.memory_space<vmem>>, vector<1x1x128xf32>
      tpu.vector_store %arg5[%c0_17, %c0_18, %c0_19], %23 {strides = array<i32>} : memref<1x1x128xf32, #tpu.memory_space<vmem>>, vector<1x1x128xf32>,
    } else {
    }
    %c0 = arith.constant 0 : index
    %c0_1 = arith.constant 0 : index
    %c0_2 = arith.constant 0 : index
    %3 = vector.load %arg2[%c0, %c0_1, %c0_2] : memref<1x128x128xbf16, #tpu.memory_space<vmem>>, vector<1x128x128xbf16>
    %4 = vector.shape_cast %3 : vector<1x128x128xbf16> to vector<128x128xbf16>
    %c0_3 = arith.constant 0 : index
    %c0_4 = arith.constant 0 : index
    %5 = vector.load %arg3[%c0_3, %c0_4] : memref<128x128xbf16, #tpu.memory_space<vmem>>, vector<128x128xbf16>
    %cst = arith.constant dense<0.000000e+00> : vector<128x128xf32>
    %6 = tpu.matmul %4, %5, %cst {dimension_numbers = #tpu.dot_dimension_numbers<[1], [0], [0], [1], [0, 0, 1, 1], [], []>} : vector<128x128xbf16>, vector<128x128xbf16>, vector<128x128xf32> -> vector<128x128xf32>
    %c0_5 = arith.constant 0 : index
    %c0_6 = arith.constant 0 : index
    %7 = vector.load %arg4[%c0_5, %c0_6] : memref<1x128xf32, #tpu.memory_space<vmem>>, vector<1x128xf32>
    %8 = vector.broadcast %7 : vector<1x128xf32> to vector<128x128xf32>
    %9 = arith.addf %6, %8 : vector<128x128xf32>
    %cst_7 = arith.constant 0.000000e+00 : f32
    %10 = vector.broadcast %cst_7 : f32 to vector<128x128xf32>
    %11 = arith.maximumf %9, %10 : vector<128x128xf32>
    %c0_8 = arith.constant 0 : index
    %c0_9 = arith.constant 0 : index
    %c0_10 = arith.constant 0 : index
    %12 = vector.load %arg5[%c0_8, %c0_9, %c0_10] : memref<1x1x128xf32, #tpu.memory_space<vmem>>, vector<1x1x128xf32>
    %13 = vector.shape_cast %12 : vector<1x1x128xf32> to vector<1x128xf32>
    %cst_11 = arith.constant dense<0.000000e+00> : vector<128xf32>
    %14 = vector.multi_reduction <add>, %11, %cst_11 [0] : vector<128x128xf32> to vector<128xf32>
    %15 = vector.shape_cast %14 : vector<128xf32> to vector<1x128xf32>
    %16 = arith.addf %13, %15 : vector<1x128xf32>
    %c0_12 = arith.constant 0 : index
    %c0_13 = arith.constant 0 : index
    %c0_14 = arith.constant 0 : index
    %17 = vector.load %arg5[%c0_12, %c0_13, %c0_14] : memref<1x1x128xf32, #tpu.memory_space<vmem>>, vector<1x1x128xf32>
    %18 = vector.shape_cast %17 : vector<1x1x128xf32> to vector<1x128xf32>
    %19 = vector.shape_cast %16 : vector<1x128xf32> to vector<1x1x128xf32>
    tpu.vector_store %arg5[%c0_12, %c0_13, %c0_14], %19 {strides = array<i32>} : memref<1x1x128xf32, #tpu.memory_space<vmem>>, vector<1x1x128xf32>,
    %c1_i32 = arith.constant 1 : i32
    %20 = arith.cmpi eq, %arg1, %c1_i32 : i32
    %21 = arith.extui %20 : i1 to i32
    %c0_i32_15 = arith.constant 0 : i32
    %22 = arith.cmpi ne, %21, %c0_i32_15 : i32
    scf.if %22 {
      %c0_16 = arith.constant 0 : index
      %c0_17 = arith.constant 0 : index
      %c0_18 = arith.constant 0 : index
      %23 = vector.load %arg5[%c0_16, %c0_17, %c0_18] : memref<1x1x128xf32, #tpu.memory_space<vmem>>, vector<1x1x128xf32>
      %cst_19 = arith.constant 3.906250e-03 : f32
      %24 = vector.broadcast %cst_19 : f32 to vector<1x1x128xf32>
      %25 = arith.mulf %23, %24 : vector<1x1x128xf32>
      %c0_20 = arith.constant 0 : index
      %c0_21 = arith.constant 0 : index
      %c0_22 = arith.constant 0 : index
      %26 = vector.load %arg5[%c0_20, %c0_21, %c0_22] : memref<1x1x128xf32, #tpu.memory_space<vmem>>, vector<1x1x128xf32>
      tpu.vector_store %arg5[%c0_20, %c0_21, %c0_22], %25 {strides = array<i32>} : memref<1x1x128xf32, #tpu.memory_space<vmem>>, vector<1x1x128xf32>,
    } else {
    }
    return
  }
  func.func @transform_0(%arg0: i32, %arg1: i32) -> (i32, i32, i32) {
    %c0_i32 = arith.constant 0 : i32
    %c0_i32_0 = arith.constant 0 : i32
    return %arg0, %arg1, %c0_i32 : i32, i32, i32
  }
  func.func @transform_1(%arg0: i32, %arg1: i32) -> (i32, i32) {
    %c0_i32 = arith.constant 0 : i32
    %c0_i32_0 = arith.constant 0 : i32
    %c0_i32_1 = arith.constant 0 : i32
    return %c0_i32, %c0_i32_0 : i32, i32
  }
  func.func @transform_2(%arg0: i32, %arg1: i32) -> (i32, i32) {
    %c0_i32 = arith.constant 0 : i32
    %c0_i32_0 = arith.constant 0 : i32
    %c0_i32_1 = arith.constant 0 : i32
    return %c0_i32, %c0_i32_0 : i32, i32
  }
  func.func @transform_3(%arg0: i32, %arg1: i32) -> (i32, i32, i32) {
    %c0_i32 = arith.constant 0 : i32
    %c0_i32_0 = arith.constant 0 : i32
    %c0_i32_1 = arith.constant 0 : i32
    return %arg0, %c0_i32, %c0_i32_0 : i32, i32, i32
  }
}

module attributes {stable_mosaic.version = 11 : i64} {
  func.func @head_kernel(%arg0: i32, %arg1: memref<2x128xf32, #tpu.memory_space<vmem>>, %arg2: memref<128x128xbf16, #tpu.memory_space<vmem>>, %arg3: memref<1x128xf32, #tpu.memory_space<vmem>>, %arg4: memref<2x128xf32, #tpu.memory_space<vmem>>, %arg5: memref<2x128xf32, #tpu.memory_space<vmem>>) attributes {dimension_semantics = [#tpu.dimension_semantics<arbitrary>], iteration_bounds = array<i64: 1>, scalar_prefetch = 0 : i64, scratch_operands = 0 : i64, tpu.core_type = #tpu.core_type<tc>, window_params = [{pipeline_mode = #tpu.pipeline_mode<synchronous>, transform_indices = @transform_0, window_bounds = array<i64: 2, 128>}, {pipeline_mode = #tpu.pipeline_mode<synchronous>, transform_indices = @transform_1, window_bounds = array<i64: 128, 128>}, {pipeline_mode = #tpu.pipeline_mode<synchronous>, transform_indices = @transform_2, window_bounds = array<i64: 1, 128>}, {pipeline_mode = #tpu.pipeline_mode<synchronous>, transform_indices = @transform_3, window_bounds = array<i64: 2, 128>}, {pipeline_mode = #tpu.pipeline_mode<synchronous>, transform_indices = @transform_4, window_bounds = array<i64: 2, 128>}]} {
    %c0 = arith.constant 0 : index
    %c0_0 = arith.constant 0 : index
    %0 = vector.load %arg1[%c0, %c0_0] : memref<2x128xf32, #tpu.memory_space<vmem>>, vector<2x128xf32>
    %1 = arith.truncf %0 : vector<2x128xf32> to vector<2x128xbf16>
    %c0_1 = arith.constant 0 : index
    %c0_2 = arith.constant 0 : index
    %2 = vector.load %arg2[%c0_1, %c0_2] : memref<128x128xbf16, #tpu.memory_space<vmem>>, vector<128x128xbf16>
    %cst = arith.constant dense<0.000000e+00> : vector<2x128xf32>
    %3 = tpu.matmul %1, %2, %cst {dimension_numbers = #tpu.dot_dimension_numbers<[1], [0], [0], [1], [0, 0, 1, 1], [], []>} : vector<2x128xbf16>, vector<128x128xbf16>, vector<2x128xf32> -> vector<2x128xf32>
    %c0_3 = arith.constant 0 : index
    %c0_4 = arith.constant 0 : index
    %4 = vector.load %arg3[%c0_3, %c0_4] : memref<1x128xf32, #tpu.memory_space<vmem>>, vector<1x128xf32>
    %5 = vector.broadcast %4 : vector<1x128xf32> to vector<2x128xf32>
    %6 = arith.addf %3, %5 : vector<2x128xf32>
    %c0_5 = arith.constant 0 : index
    %c0_6 = arith.constant 0 : index
    %7 = vector.load %arg5[%c0_5, %c0_6] : memref<2x128xf32, #tpu.memory_space<vmem>>, vector<2x128xf32>
    tpu.vector_store %arg5[%c0_5, %c0_6], %6 {strides = array<i32>} : memref<2x128xf32, #tpu.memory_space<vmem>>, vector<2x128xf32>,
    %8 = arith.mulf %0, %0 : vector<2x128xf32>
    %cst_7 = arith.constant dense<0.000000e+00> : vector<2xf32>
    %9 = vector.multi_reduction <add>, %8, %cst_7 [1] : vector<2x128xf32> to vector<2xf32>
    %10 = vector.shape_cast %9 : vector<2xf32> to vector<2x1xf32>
    %11 = math.sqrt %10 : vector<2x1xf32>
    %cst_8 = arith.constant 9.99999997E-7 : f32
    %12 = vector.broadcast %cst_8 : f32 to vector<2x1xf32>
    %13 = arith.addf %11, %12 : vector<2x1xf32>
    %14 = vector.broadcast %13 : vector<2x1xf32> to vector<2x128xf32>
    %15 = arith.divf %0, %14 : vector<2x128xf32>
    %c0_9 = arith.constant 0 : index
    %c0_10 = arith.constant 0 : index
    %16 = vector.load %arg4[%c0_9, %c0_10] : memref<2x128xf32, #tpu.memory_space<vmem>>, vector<2x128xf32>
    tpu.vector_store %arg4[%c0_9, %c0_10], %15 {strides = array<i32>} : memref<2x128xf32, #tpu.memory_space<vmem>>, vector<2x128xf32>,
    return
  }
  func.func @transform_0(%arg0: i32) -> (i32, i32) {
    %c0_i32 = arith.constant 0 : i32
    %c0_i32_0 = arith.constant 0 : i32
    %c0_i32_1 = arith.constant 0 : i32
    return %c0_i32, %c0_i32_0 : i32, i32
  }
  func.func @transform_1(%arg0: i32) -> (i32, i32) {
    %c0_i32 = arith.constant 0 : i32
    %c0_i32_0 = arith.constant 0 : i32
    %c0_i32_1 = arith.constant 0 : i32
    return %c0_i32, %c0_i32_0 : i32, i32
  }
  func.func @transform_2(%arg0: i32) -> (i32, i32) {
    %c0_i32 = arith.constant 0 : i32
    %c0_i32_0 = arith.constant 0 : i32
    %c0_i32_1 = arith.constant 0 : i32
    return %c0_i32, %c0_i32_0 : i32, i32
  }
  func.func @transform_3(%arg0: i32) -> (i32, i32) {
    %c0_i32 = arith.constant 0 : i32
    %c0_i32_0 = arith.constant 0 : i32
    %c0_i32_1 = arith.constant 0 : i32
    return %c0_i32, %c0_i32_0 : i32, i32
  }
  func.func @transform_4(%arg0: i32) -> (i32, i32) {
    %c0_i32 = arith.constant 0 : i32
    %c0_i32_0 = arith.constant 0 : i32
    %c0_i32_1 = arith.constant 0 : i32
    return %c0_i32, %c0_i32_0 : i32, i32
  }
}

</mosaic_0001>

<llo_original>
// kernel: image_retrieval_forward.2
$region0: #{image_retrieval_forward.2}
  #allocation0 [shape = 'u32[]', space=smem, size = 0x4, offset = 0x4, fixed_abs, tag = 'smem constant byte address 0x4 - core index']
  #allocation1 [shape = 'u32[72,128]{1,0:T(1,128)}', space=vmem, size = 0x9000, scoped, tag = 'internal scratch']
  %s0 = inlined_call_operand.vmem [shape: bf16[2,256,128], index: 0, kind: input, shape index: {}]
  %s1 = inlined_call_operand.vmem [shape: bf16[128,128], index: 1, kind: input, shape index: {}]
  %s2 = inlined_call_operand.vmem [shape: f32[1,128], index: 2, kind: input, shape index: {}]
  %s3 = inlined_call_operand.vmem [shape: f32[2,1,128], index: 3, kind: output, shape index: {}]
  %s4 = sld [smem:[#allocation0]]
  $region53: #{image_retrieval_forward.2} parent=0
    _
  %s6 = ssub.s32 1, %s4
  %s7 = scalar_select 0, %s6, %s4
  loop: start=0, step=1, limit=6
  $region2: #{image_retrieval_forward.2} parent=0 // loop_pre_header
    _
  $region3: #{image_retrieval_forward.2} parent=0 // loop_header
    %s9 = sphi 0, %s13
    %p10 = scmp.ge.s32.totalorder %s9, 6
    %s16 = sphi 0, %s28
    %s17 = sphi 0, %s24
    %s18 = sphi 0, %s16
    %s19 = sphi 0, %s17
    %s20 = sphi 0, %s18
    %s21 = sphi 0, %s19
    %s33 = sphi 0, %s35
    %s36 = sphi 0, %s33
    %s37 = sphi 0, %s36
    %s53 = sphi 0, %s37
    %s57 = sphi 0, %s57
    %s59 = sphi 0, %s57
    %s60 = sphi 0, %s59
    %s74 = sphi 0, %s60
    %s78 = sphi 0, %s78
    %s80 = sphi 0, %s78
    %s81 = sphi 0, %s80
    %s95 = sphi 0, %s81
    %s101 = sphi 0, %s103
    %s104 = sphi 0, %s101
    %s105 = sphi 0, %s104
    %s121 = sphi 0, %s105
  $region4: #{image_retrieval_forward.2} parent=0 // loop_header_branch
    %12 = sbr.rel (%p10) target = $region8
  $region5: #{image_retrieval_forward.2} parent=0 // loop_body
    %s14 = ssub.s32 %s9, 1
    %s15 = ssub.s32 %s9, 2
    %s22 = sadd.s32 1, %s17
    %p23 = scmp.ge.s32.totalorder %s22, 2
    %s24 = scalar_select %p23, 0, %s22
    %s25 = sadd.s32 1, %s16
    %s26 = scalar_select %p23, %s25, %s16
    %p27 = scmp.ge.s32.totalorder %s26, 2
    %s28 = scalar_select %p27, 0, %s26
    %s29 = ssub.s32 %s16, %s28
    %s30 = ssub.s32 %s17, %s24
    %s31 = sor.u32 %s29, %s30
    %p32 = scmp.eq.s32.totalorder %s31, 0
    %s34 = sadd.s32 %s33, 1
    %s35 = scalar_select %p32, %s33, %s34
    %p38 = pneg %p32
    %p39 = scmp.eq.s32.totalorder %s9, 3
    %p40 = por %p38, %p39
    %p41 = scmp.ne.s32.totalorder %s33, %s36
    %p42 = scmp.eq.s32.totalorder %s9, 0
    %p43 = por %p41, %p42
    %p44 = scmp.ne.s32.totalorder %s33, %s36
    %p45 = scmp.eq.s32.totalorder %s14, 3
    %p46 = por %p44, %p45
    %p47 = scmp.ne.s32.totalorder %s36, %s37
    %p48 = scmp.eq.s32.totalorder %s14, 0
    %p49 = por %p47, %p48
    %p50 = scmp.ne.s32.totalorder %s36, %s37
    %p51 = scmp.eq.s32.totalorder %s15, 3
    %p52 = por %p50, %p51
    %p54 = scmp.ne.s32.totalorder %s37, %s53
    %p55 = scmp.eq.s32.totalorder %s15, 0
    %p56 = por %p54, %p55
    %s58 = sadd.s32 %s57, 1
    %p61 = scmp.eq.s32.totalorder %s9, 3
    %p62 = scmp.ne.s32.totalorder %s57, %s59
    %p63 = scmp.eq.s32.totalorder %s9, 0
    %p64 = por %p62, %p63
    %p65 = scmp.ne.s32.totalorder %s57, %s59
    %p66 = scmp.eq.s32.totalorder %s14, 3
    %p67 = por %p65, %p66
    %p68 = scmp.ne.s32.totalorder %s59, %s60
    %p69 = scmp.eq.s32.totalorder %s14, 0
    %p70 = por %p68, %p69
    %p71 = scmp.ne.s32.totalorder %s59, %s60
    %p72 = scmp.eq.s32.totalorder %s15, 3
    %p73 = por %p71, %p72
    %p75 = scmp.ne.s32.totalorder %s60, %s74
    %p76 = scmp.eq.s32.totalorder %s15, 0
    %p77 = por %p75, %p76
    %s79 = sadd.s32 %s78, 1
    %p82 = scmp.eq.s32.totalorder %s9, 3
    %p83 = scmp.ne.s32.totalorder %s78, %s80
    %p84 = scmp.eq.s32.totalorder %s9, 0
    %p85 = por %p83, %p84
    %p86 = scmp.ne.s32.totalorder %s78, %s80
    %p87 = scmp.eq.s32.totalorder %s14, 3
    %p88 = por %p86, %p87
    %p89 = scmp.ne.s32.totalorder %s80, %s81
    %p90 = scmp.eq.s32.totalorder %s14, 0
    %p91 = por %p89, %p90
    %p92 = scmp.ne.s32.totalorder %s80, %s81
    %p93 = scmp.eq.s32.totalorder %s15, 3
    %p94 = por %p92, %p93
    %p96 = scmp.ne.s32.totalorder %s81, %s95
    %p97 = scmp.eq.s32.totalorder %s15, 0
    %p98 = por %p96, %p97
    %s99 = ssub.s32 %s16, %s28
    %p100 = scmp.eq.s32.totalorder %s99, 0
    %s102 = sadd.s32 %s101, 1
    %s103 = scalar_select %p100, %s101, %s102
    %p106 = pneg %p100
    %p107 = scmp.eq.s32.totalorder %s9, 3
    %p108 = por %p106, %p107
    %p109 = scmp.ne.s32.totalorder %s101, %s104
    %p110 = scmp.eq.s32.totalorder %s9, 0
    %p111 = por %p109, %p110
    %p112 = scmp.ne.s32.totalorder %s101, %s104
    %p113 = scmp.eq.s32.totalorder %s14, 3
    %p114 = por %p112, %p113
    %p115 = scmp.ne.s32.totalorder %s104, %s105
    %p116 = scmp.eq.s32.totalorder %s14, 0
    %p117 = por %p115, %p116
    %p118 = scmp.ne.s32.totalorder %s104, %s105
    %p119 = scmp.eq.s32.totalorder %s15, 3
    %p120 = por %p118, %p119
    %p122 = scmp.ne.s32.totalorder %s105, %s121
    %p123 = scmp.eq.s32.totalorder %s15, 0
    %p124 = por %p122, %p123
    %p125 = scmp.le.s32.totalorder 1, %s9
    %p126 = scmp.lt.s32.totalorder %s9, 5
    %p127 = pnand %p125, %p126
    %p128 = pneg %p127
    // Predicated region
    $region9: #{image_retrieval_forward.2} parent=5 // pred_check
      _
    $region10: #{image_retrieval_forward.2} parent=5 // pred_check_branch
      %130 = sbr.rel (%p127) target = $region12
    $region11: #{image_retrieval_forward.2} parent=5 // pred_region
      %s131 = ssub.s32 %s9, 1
      // Predicated region
      $region13: #{image_retrieval_forward.2} parent=11 // pred_check
        %p132 = pneg %p70
      $region14: #{image_retrieval_forward.2} parent=11 // pred_check_branch
        %134 = sbr.rel (%p132) target = $region16
      $region15: #{image_retrieval_forward.2} parent=11 // pred_region
        _
      $region16: #{image_retrieval_forward.2} parent=11 // pred_fallthru
        _
      // Predicated region
      $region17: #{image_retrieval_forward.2} parent=11 // pred_check
        %p135 = pneg %p91
      $region18: #{image_retrieval_forward.2} parent=11 // pred_check_branch
        %137 = sbr.rel (%p135) target = $region20
      $region19: #{image_retrieval_forward.2} parent=11 // pred_region
        _
      $region20: #{image_retrieval_forward.2} parent=11 // pred_fallthru
        _
    $region12: #{image_retrieval_forward.2} parent=5 // pred_fallthru
      _
    %p138 = scmp.lt.s32.totalorder %s9, 4
    // Predicated region
    $region21: #{image_retrieval_forward.2} parent=5 // pred_check
      %p139 = pneg %p138
    $region22: #{image_retrieval_forward.2} parent=5 // pred_check_branch
      %141 = sbr.rel (%p139) target = $region24
    $region23: #{image_retrieval_forward.2} parent=5 // pred_region
      // Predicated region
      $region25: #{image_retrieval_forward.2} parent=23 // pred_check
        %p142 = pneg %p43
      $region26: #{image_retrieval_forward.2} parent=23 // pred_check_branch
        %144 = sbr.rel (%p142) target = $region28
      $region27: #{image_retrieval_forward.2} parent=23 // pred_region
        %s145 = smul.u32 16, %s17
        %p146 = scmp.lt.s32.totalorder %s16, 1
        %s147 = scalar_select %p146, %s16, 1
        %p148 = scmp.lt.s32.totalorder %s145, 31
        %s149 = scalar_select %p148, %s145, 31
        %s150 = smul.addr %s147, 32
        %s151 = sadd.s32 %s149, %s150
        %s152 = smul.addr %s151, 4
        %s153 = scalar_lea.vmem %s0, %s152
        %s154 = smul.u32 16, %s17
      $region28: #{image_retrieval_forward.2} parent=23 // pred_fallthru
        _
    $region24: #{image_retrieval_forward.2} parent=5 // pred_fallthru
      _
    %p155 = scmp.le.s32.totalorder 1, %s9
    %p156 = scmp.lt.s32.totalorder %s9, 5
    %p157 = pnand %p155, %p156
    %p158 = pneg %p157
    // Predicated region
    $region29: #{image_retrieval_forward.2} parent=5 // pred_check
      _
    $region30: #{image_retrieval_forward.2} parent=5 // pred_check_branch
      %160 = sbr.rel (%p157) target = $region32
    $region31: #{image_retrieval_forward.2} parent=5 // pred_region
      %s161 = ssub.s32 %s9, 1
      %s162 = smul.u32 16, %s19
      %p163 = scmp.lt.s32.totalorder %s18, 1
      %s164 = scalar_select %p163, %s18, 1
      %p165 = scmp.lt.s32.totalorder %s162, 31
      %s166 = scalar_select %p165, %s162, 31
      %s167 = smul.addr %s164, 32
      %s168 = sadd.s32 %s166, %s167
      %s169 = smul.addr %s168, 4
      %s170 = scalar_lea.vmem %s0, %s169
      %p171 = pneg %p49
      %p172 = pneg %p46
      %p173 = pneg %p70
      %p174 = pneg %p67
      %p175 = pneg %p91
      %p176 = pneg %p88
      %p177 = pneg %p117
      %p178 = pneg %p114
      %p179 = scmp.lt.s32.totalorder %s18, 1
      %s180 = scalar_select %p179, %s18, 1
      %s181 = scalar_lea.vmem %s3, %s180
      %s182 = smul.u32 16, %s19
      %p183 = scmp.lt.s32.totalorder %s18, 1
      %s184 = scalar_select %p183, %s18, 1
      %p185 = scmp.lt.s32.totalorder %s182, 31
      %s186 = scalar_select %p185, %s182, 31
      %s187 = smul.addr %s184, 32
      %s188 = sadd.s32 %s186, %s187
      %s189 = smul.addr %s188, 4
      %s190 = scalar_lea.vmem %s0, %s189
      %s191 = smul.u32 16, %s19
      %p192 = scmp.lt.s32.totalorder %s18, 1
      %s193 = scalar_select %p192, %s18, 1
      %s194 = scalar_lea.vmem %s3, %s193
      %p195 = scmp.eq.s32.totalorder %s19, 0
      // Predicated region
      $region33: #{image_retrieval_forward.2} parent=31 // pred_check
        %p196 = pneg %p195
      $region34: #{image_retrieval_forward.2} parent=31 // pred_check_branch
        %198 = sbr.rel (%p196) target = $region36
      $region35: #{image_retrieval_forward.2} parent=31 // pred_region
        %199 = vst [vmem:[%s194] sm:$0x1] 0.0
      $region36: #{image_retrieval_forward.2} parent=31 // pred_fallthru
        _
      %v200 = vld [vmem:[%s190] sm:$0xf]
      %v201 = vld [vmem:[%s190 + $0x4] sm:$0xf]
      %v202 = vld [vmem:[%s190 + $0x8] sm:$0xf]
      %v203 = vld [vmem:[%s190 + $0xc] sm:$0xf]
      %v204 = vld [vmem:[%s190 + $0x10] sm:$0xf]
      %v205 = vld [vmem:[%s190 + $0x14] sm:$0xf]
      %v206 = vld [vmem:[%s190 + $0x18] sm:$0xf]
      %v207 = vld [vmem:[%s190 + $0x1c] sm:$0xf]
      %v208 = vld [vmem:[%s190 + $0x20] sm:$0xf]
      %v209 = vld [vmem:[%s190 + $0x24] sm:$0xf]
      %v210 = vld [vmem:[%s190 + $0x28] sm:$0xf]
      %v211 = vld [vmem:[%s190 + $0x2c] sm:$0xf]
      %v212 = vld [vmem:[%s190 + $0x30] sm:$0xf]
      %v213 = vld [vmem:[%s190 + $0x34] sm:$0xf]
      %v214 = vld [vmem:[%s190 + $0x38] sm:$0xf]
      %v215 = vld [vmem:[%s190 + $0x3c] sm:$0xf]
      %v216 = vld [vmem:[%s1] sm:$0xf]
      %v217 = vld [vmem:[%s1 + $0x4] sm:$0xf]
      %v218 = vld [vmem:[%s1 + $0x8] sm:$0xf]
      %v219 = vld [vmem:[%s1 + $0xc] sm:$0xf]
      %v220 = vld [vmem:[%s1 + $0x10] sm:$0xf]
      %v221 = vld [vmem:[%s1 + $0x14] sm:$0xf]
      %v222 = vld [vmem:[%s1 + $0x18] sm:$0xf]
      %v223 = vld [vmem:[%s1 + $0x1c] sm:$0xf]
      %v224 = vld [vmem:[%s1 + $0x20] sm:$0xf]
      %v225 = vld [vmem:[%s1 + $0x24] sm:$0xf]
      %v226 = vld [vmem:[%s1 + $0x28] sm:$0xf]
      %v227 = vld [vmem:[%s1 + $0x2c] sm:$0xf]
      %v228 = vld [vmem:[%s1 + $0x30] sm:$0xf]
      %v229 = vld [vmem:[%s1 + $0x34] sm:$0xf]
      %v230 = vld [vmem:[%s1 + $0x38] sm:$0xf]
      %v231 = vld [vmem:[%s1 + $0x3c] sm:$0xf]
      %v232 = vld [vmem:[%s2] sm:$0x1]
      %v234 = vperm.slane %v232, 0
      %v252 = vunpack.c.l.b16 %v200
      %v253 = vunpack.c.l.b16 %v201
      %v254 = vunpack.c.l.b16 %v202
      %v255 = vunpack.c.l.b16 %v203
      %v256 = vunpack.c.l.b16 %v204
      %v257 = vunpack.c.l.b16 %v205
      %v258 = vunpack.c.l.b16 %v206
      %v259 = vunpack.c.l.b16 %v207
      %v260 = vunpack.c.l.b16 %v208
      %v261 = vunpack.c.l.b16 %v209
      %v262 = vunpack.c.l.b16 %v210
      %v263 = vunpack.c.l.b16 %v211
      %v264 = vunpack.c.l.b16 %v212
      %v265 = vunpack.c.l.b16 %v213
      %v266 = vunpack.c.l.b16 %v214
      %v267 = vunpack.c.l.b16 %v215
      %v268 = vpack.c.b16 %v253, %v252
      %v269 = vpack.c.b16 %v255, %v254
      %v270 = vpack.c.b16 %v257, %v256
      %v271 = vpack.c.b16 %v259, %v258
      %v272 = vpack.c.b16 %v261, %v260
      %v273 = vpack.c.b16 %v263, %v262
      %v274 = vpack.c.b16 %v265, %v264
      %v275 = vpack.c.b16 %v267, %v266
      %v300 = vunpack.c.l.b16 %v216
      %v301 = vunpack.c.l.b16 %v217
      %v302 = vunpack.c.l.b16 %v218
      %v303 = vunpack.c.l.b16 %v219
      %v304 = vunpack.c.l.b16 %v220
      %v305 = vunpack.c.l.b16 %v221
      %v306 = vunpack.c.l.b16 %v222
      %v307 = vunpack.c.l.b16 %v223
      %v308 = vunpack.c.l.b16 %v224
      %v309 = vunpack.c.l.b16 %v225
      %v310 = vunpack.c.l.b16 %v226
      %v311 = vunpack.c.l.b16 %v227
      %v312 = vunpack.c.l.b16 %v228
      %v313 = vunpack.c.l.b16 %v229
      %v314 = vunpack.c.l.b16 %v230
      %v315 = vunpack.c.l.b16 %v231
      %v316 = vpack.c.b16 %v301, %v300
      %v317 = vpack.c.b16 %v303, %v302
      %v318 = vpack.c.b16 %v305, %v304
      %v319 = vpack.c.b16 %v307, %v306
      %v320 = vpack.c.b16 %v309, %v308
      %v321 = vpack.c.b16 %v311, %v310
      %v322 = vpack.c.b16 %v313, %v312
      %v323 = vpack.c.b16 %v315, %v314
      %332 = vmatpush.bf16.msra.mxu0 %v323
      %333 = vmatpush.bf16.msra.mxu0 %v322
      %334 = vmatpush.bf16.msra.mxu0 %v321
      %335 = vmatpush.bf16.msra.mxu0 %v320
      %336 = vmatpush.bf16.msra.mxu0 %v319
      %337 = vmatpush.bf16.msra.mxu0 %v318
      %338 = vmatpush.bf16.msra.mxu0 %v317
      %339 = vmatpush.bf16.msra.mxu0 %v316
      %340 = vmatmul.bf16.gmra.mxu0 %v268
      %v341 = vpop.f32.mrf.mxu0
      %v342 = vadd.f32 %v234, %v341
      %v343 = vpop.f32.mrf.mxu0
      %v344 = vadd.f32 %v234, %v343
      %345 = vmatmul.bf16.gmra.mxu0 %v269
      %v346 = vpop.f32.mrf.mxu0
      %v347 = vadd.f32 %v234, %v346
      %v348 = vpop.f32.mrf.mxu0
      %v349 = vadd.f32 %v234, %v348
      %350 = vmatmul.bf16.gmra.mxu0 %v270
      %v351 = vpop.f32.mrf.mxu0
      %v352 = vadd.f32 %v234, %v351
      %v353 = vpop.f32.mrf.mxu0
      %v354 = vadd.f32 %v234, %v353
      %355 = vmatmul.bf16.gmra.mxu0 %v271
      %v356 = vpop.f32.mrf.mxu0
      %v357 = vadd.f32 %v234, %v356
      %v358 = vpop.f32.mrf.mxu0
      %v359 = vadd.f32 %v234, %v358
      %360 = vmatmul.bf16.gmra.mxu0 %v272
      %v361 = vpop.f32.mrf.mxu0
      %v362 = vadd.f32 %v234, %v361
      %v363 = vpop.f32.mrf.mxu0
      %v364 = vadd.f32 %v234, %v363
      %365 = vmatmul.bf16.gmra.mxu0 %v273
      %v366 = vpop.f32.mrf.mxu0
      %v367 = vadd.f32 %v234, %v366
      %v368 = vpop.f32.mrf.mxu0
      %v369 = vadd.f32 %v234, %v368
      %370 = vmatmul.bf16.gmra.mxu0 %v274
      %v371 = vpop.f32.mrf.mxu0
      %v372 = vadd.f32 %v234, %v371
      %v373 = vpop.f32.mrf.mxu0
      %v374 = vadd.f32 %v234, %v373
      %375 = vmatmul.bf16.gmra.mxu0 %v275
      %v376 = vpop.f32.mrf.mxu0
      %v377 = vadd.f32 %v234, %v376
      %v378 = vpop.f32.mrf.mxu0
      %v379 = vadd.f32 %v234, %v378
      %380 = vdwg.mxu0
      %v381 = vmax.f32 %v342, 0.0
      %v382 = vmax.f32 %v344, 0.0
      %v383 = vmax.f32 %v347, 0.0
      %v384 = vmax.f32 %v349, 0.0
      %v385 = vmax.f32 %v352, 0.0
      %v386 = vmax.f32 %v354, 0.0
      %v387 = vmax.f32 %v357, 0.0
      %v388 = vmax.f32 %v359, 0.0
      %v389 = vmax.f32 %v362, 0.0
      %v390 = vmax.f32 %v364, 0.0
      %v391 = vmax.f32 %v367, 0.0
      %v392 = vmax.f32 %v369, 0.0
      %v393 = vmax.f32 %v372, 0.0
      %v394 = vmax.f32 %v374, 0.0
      %v395 = vmax.f32 %v377, 0.0
      %v396 = vmax.f32 %v379, 0.0
      %v397 = vld [vmem:[%s194] sm:$0x1]
      %v398 = vadd.f32 %v381, %v382
      %v399 = vadd.f32 %v398, %v383
      %v400 = vadd.f32 %v399, %v384
      %v401 = vadd.f32 %v400, %v385
      %v402 = vadd.f32 %v401, %v386
      %v403 = vadd.f32 %v402, %v387
      %v404 = vadd.f32 %v403, %v388
      %v405 = vadd.f32 %v404, %v389
      %v406 = vadd.f32 %v405, %v390
      %v407 = vadd.f32 %v406, %v391
      %v408 = vadd.f32 %v407, %v392
      %v409 = vadd.f32 %v408, %v393
      %v410 = vadd.f32 %v409, %v394
      %v411 = vadd.f32 %v410, %v395
      %v412 = vadd.f32 %v411, %v396
      %v413 = vrot.slane %v412, 4
      %v414 = vadd.f32 %v412, %v413
      %v415 = vrot.slane %v414, 2
      %v416 = vadd.f32 %v414, %v415
      %v417 = vrot.slane %v416, 1
      %v418 = vadd.f32 %v416, %v417
      %v419 = vadd.f32 %v397, %v418
      %420 = vst [vmem:[%s194] sm:$0x1] %v419
      %p421 = scmp.eq.s32.totalorder %s19, 1
      // Predicated region
      $region37: #{image_retrieval_forward.2} parent=31 // pred_check
        %p422 = pneg %p421
      $region38: #{image_retrieval_forward.2} parent=31 // pred_check_branch
        %424 = sbr.rel (%p422) target = $region40
      $region39: #{image_retrieval_forward.2} parent=31 // pred_region
        %v425 = vld [vmem:[%s194] sm:$0x1]
        %v426 = vmul.f32 %v425, 0.00390625
        %427 = vst [vmem:[%s194] sm:$0x1] %v426
      $region40: #{image_retrieval_forward.2} parent=31 // pred_fallthru
        _
      %p428 = scmp.lt.s32.totalorder %s18, 1
      %s429 = scalar_select %p428, %s18, 1
      %s430 = scalar_lea.vmem %s3, %s429
      // Predicated region
      $region41: #{image_retrieval_forward.2} parent=31 // pred_check
        %p431 = pneg %p114
      $region42: #{image_retrieval_forward.2} parent=31 // pred_check_branch
        %433 = sbr.rel (%p431) target = $region44
      $region43: #{image_retrieval_forward.2} parent=31 // pred_region
        _
      $region44: #{image_retrieval_forward.2} parent=31 // pred_fallthru
        _
    $region32: #{image_retrieval_forward.2} parent=5 // pred_fallthru
      _
    %p434 = scmp.le.s32.totalorder 2, %s9
    // Predicated region
    $region45: #{image_retrieval_forward.2} parent=5 // pred_check
      %p435 = pneg %p434
    $region46: #{image_retrieval_forward.2} parent=5 // pred_check_branch
      %437 = sbr.rel (%p435) target = $region48
    $region47: #{image_retrieval_forward.2} parent=5 // pred_region
      %s438 = ssub.s32 %s9, 2
      // Predicated region
      $region49: #{image_retrieval_forward.2} parent=47 // pred_check
        %p439 = pneg %p120
      $region50: #{image_retrieval_forward.2} parent=47 // pred_check_branch
        %441 = sbr.rel (%p439) target = $region52
      $region51: #{image_retrieval_forward.2} parent=47 // pred_region
        %p442 = scmp.lt.s32.totalorder %s20, 1
        %s443 = scalar_select %p442, %s20, 1
        %s444 = scalar_lea.vmem %s3, %s443
      $region52: #{image_retrieval_forward.2} parent=47 // pred_fallthru
        _
    $region48: #{image_retrieval_forward.2} parent=5 // pred_fallthru
      _
  $region6: #{image_retrieval_forward.2} parent=0 // loop_footer
    %s13 = sadd.s32 1, %s9
  $region7: #{image_retrieval_forward.2} parent=0 // loop_footer_branch
    %8 = sbr.rel target = $region3
  $region8: #{image_retrieval_forward.2} parent=0 // loop_exit
    _

// kernel: image_retrieval_forward.3
$region0: #{image_retrieval_forward.3}
  #allocation0 [shape = 'u32[]', space=smem, size = 0x4, offset = 0x4, fixed_abs, tag = 'smem constant byte address 0x4 - core index']
  #allocation1 [shape = 'u32[72,128]{1,0:T(1,128)}', space=vmem, size = 0x9000, scoped, tag = 'internal scratch']
  %s0 = inlined_call_operand.vmem [shape: f32[2,128], index: 0, kind: input, shape index: {}]
  %s1 = inlined_call_operand.vmem [shape: bf16[128,128], index: 1, kind: input, shape index: {}]
  %s2 = inlined_call_operand.vmem [shape: f32[1,128], index: 2, kind: input, shape index: {}]
  %s3 = inlined_call_operand.hbm [shape: f32[2,128], index: 3, kind: output, shape index: {0}]
  %s4 = inlined_call_operand.hbm [shape: f32[2,128], index: 4, kind: output, shape index: {1}]
  %5 = xla_tuple %s3, %s4
  %s6 = sld [smem:[#allocation0]]
  $region30: #{image_retrieval_forward.3} parent=0
    _
  %s8 = ssub.s32 1, %s6
  %s9 = scalar_select 0, %s8, %s6
  $region1: #{image_retrieval_forward.3} parent=0
    #allocation2 [shape = 'u8[1024]{0}', space=vmem, size = 0x400, scoped, tag = 'output window, operand 0, single buffered']
    #allocation3 [shape = 's32[1]{0}', space=sflag, size = 0x4, scoped, tag = 'scoped memory for image_retrieval_forward.3']
    #allocation4 [shape = 'u8[1024]{0}', space=vmem, size = 0x400, scoped, tag = 'output window, operand 1, single buffered']
    #allocation5 [shape = 's32[1]{0}', space=sflag, size = 0x4, scoped, tag = 'scoped memory for image_retrieval_forward.3']
    %10 = vsyncpa [#allocation3], 0
    %11 = vsyncpa [#allocation5], 0
    // Predicated region
    $region2: #{image_retrieval_forward.3} parent=1 // pred_check
      _
    $region3: #{image_retrieval_forward.3} parent=1 // pred_check_branch
      %13 = sbr.rel (0) target = $region5
    $region4: #{image_retrieval_forward.3} parent=1 // pred_region
      _
    $region5: #{image_retrieval_forward.3} parent=1 // pred_fallthru
      _
    // Predicated region
    $region6: #{image_retrieval_forward.3} parent=1 // pred_check
      _
    $region7: #{image_retrieval_forward.3} parent=1 // pred_check_branch
      %15 = sbr.rel (0) target = $region9
    $region8: #{image_retrieval_forward.3} parent=1 // pred_region
      _
    $region9: #{image_retrieval_forward.3} parent=1 // pred_fallthru
      _
    // Predicated region
    $region10: #{image_retrieval_forward.3} parent=1 // pred_check
      _
    $region11: #{image_retrieval_forward.3} parent=1 // pred_check_branch
      %17 = sbr.rel (0) target = $region13
    $region12: #{image_retrieval_forward.3} parent=1 // pred_region
      _
    $region13: #{image_retrieval_forward.3} parent=1 // pred_fallthru
      _
    %v18 = vld [vmem:[%s0] sm:$0x3]
    %v19 = vpack.c.bf16 %v18, %v18
    %v20 = vld [vmem:[%s1] sm:$0xf]
    %v21 = vld [vmem:[%s1 + $0x4] sm:$0xf]
    %v22 = vld [vmem:[%s1 + $0x8] sm:$0xf]
    %v23 = vld [vmem:[%s1 + $0xc] sm:$0xf]
    %v24 = vld [vmem:[%s1 + $0x10] sm:$0xf]
    %v25 = vld [vmem:[%s1 + $0x14] sm:$0xf]
    %v26 = vld [vmem:[%s1 + $0x18] sm:$0xf]
    %v27 = vld [vmem:[%s1 + $0x1c] sm:$0xf]
    %v28 = vld [vmem:[%s1 + $0x20] sm:$0xf]
    %v29 = vld [vmem:[%s1 + $0x24] sm:$0xf]
    %v30 = vld [vmem:[%s1 + $0x28] sm:$0xf]
    %v31 = vld [vmem:[%s1 + $0x2c] sm:$0xf]
    %v32 = vld [vmem:[%s1 + $0x30] sm:$0xf]
    %v33 = vld [vmem:[%s1 + $0x34] sm:$0xf]
    %v34 = vld [vmem:[%s1 + $0x38] sm:$0xf]
    %v35 = vld [vmem:[%s1 + $0x3c] sm:$0xf]
    %v36 = vld [vmem:[%s2] sm:$0x1]
    %v38 = vperm.slane %v36, 0
    %v56 = vunpack.c.l.b16 %v20
    %v57 = vunpack.c.l.b16 %v21
    %v58 = vunpack.c.l.b16 %v22
    %v59 = vunpack.c.l.b16 %v23
    %v60 = vunpack.c.l.b16 %v24
    %v61 = vunpack.c.l.b16 %v25
    %v62 = vunpack.c.l.b16 %v26
    %v63 = vunpack.c.l.b16 %v27
    %v64 = vunpack.c.l.b16 %v28
    %v65 = vunpack.c.l.b16 %v29
    %v66 = vunpack.c.l.b16 %v30
    %v67 = vunpack.c.l.b16 %v31
    %v68 = vunpack.c.l.b16 %v32
    %v69 = vunpack.c.l.b16 %v33
    %v70 = vunpack.c.l.b16 %v34
    %v71 = vunpack.c.l.b16 %v35
    %v72 = vpack.c.b16 %v57, %v56
    %v73 = vpack.c.b16 %v59, %v58
    %v74 = vpack.c.b16 %v61, %v60
    %v75 = vpack.c.b16 %v63, %v62
    %v76 = vpack.c.b16 %v65, %v64
    %v77 = vpack.c.b16 %v67, %v66
    %v78 = vpack.c.b16 %v69, %v68
    %v79 = vpack.c.b16 %v71, %v70
    %88 = vmatpush.bf16.msra.mxu0 %v79
    %89 = vmatpush.bf16.msra.mxu0 %v78
    %90 = vmatpush.bf16.msra.mxu0 %v77
    %91 = vmatpush.bf16.msra.mxu0 %v76
    %92 = vmatpush.bf16.msra.mxu0 %v75
    %93 = vmatpush.bf16.msra.mxu0 %v74
    %94 = vmatpush.bf16.msra.mxu0 %v73
    %95 = vmatpush.bf16.msra.mxu0 %v72
    %96 = vmatmul.bf16.gmra.mxu0 %v19
    %v97 = vpop.f32.mrf.mxu0
    %v98 = vadd.f32 %v38, %v97
    %v99 = vpop.f32.mrf.mxu0
    %100 = vdwg.mxu0
    %101 = vst [vmem:[#allocation4] sm:$0x3] %v98
    %v102 = vmul.f32 %v18, %v18
    %vm103 = vcmask 1041408
    %v104 = vsel %vm103, %v102, 0.0
    %105 = vadd.xlane.f32.xlu0 %v104
    %v106 = vpop.xlane.xlu0 %105
    %v107 = vrsqrt.pop %v106
    %v108 = vmul.f32 %v107, %v106
    %v109 = vmul.f32 %v108, %v107
    %v110 = vmul.f32 0.5, %v109
    %v111 = vsub.f32 1.5, %v110
    %v112 = vmul.f32 %v107, %v111
    %v113 = vmul.f32 %v106, %v112
    %vm114 = vcmp.eq.f32.partialorder %v106, inf
    %v115 = vsel %vm114, %v106, %v113
    %vm116 = vcmp.eq.f32.partialorder %v106, 0.0
    %v117 = vand.u32 %v106, 2147483648
    %v118 = vsel %vm116, %v117, %v115
    %v119 = vadd.f32 %v118, 1e-06
    %v120 = vrcp.pop %v119
    %v121 = vmul.f32 %v119, %v120
    %v122 = vsub.f32 1.0, %v121
    %v123 = vmul.f32 %v120, %v122
    %v124 = vadd.f32 %v120, %v123
    %vm125 = vweird.f32 %v119
    %vm126 = vweird.f32 %v120
    %vm127 = vmor %vm125, %vm126
    %v128 = vsel %vm127, %v120, %v124
    %v129 = vand.u32 2147483647, %v119
    %vm130 = vcmp.eq.f32.partialorder %v129, 8.507059e+37
    %v131 = vand.u32 %v119, 2147483648
    %v132 = vor.u32 1.1754944e-38, %v131
    %v133 = vsel %vm130, %v132, %v128
    %v134 = vmul.f32 %v18, %v133
    %135 = vst [vmem:[#allocation2] sm:$0x3] %v134
    // Predicated region
    $region14: #{image_retrieval_forward.3} parent=1 // pred_check
      _
    $region15: #{image_retrieval_forward.3} parent=1 // pred_check_branch
      %137 = sbr.rel (0) target = $region17
    $region16: #{image_retrieval_forward.3} parent=1 // pred_region
      %139 = vsyncadd [#allocation3], 0
      %s141 = sshll.u32 [#allocation2], 4
      %s142 = int_to_ptr.vmem [resolvable:$true] %s141
      %s143 = sshll.u32 %s3, 4
      %s144 = int_to_ptr.hbm [resolvable:$true] %s143
      %146 = dma.vmem_to_hbm [thread:$0]  %s142, 32, %s144, [#allocation3]
    $region17: #{image_retrieval_forward.3} parent=1 // pred_fallthru
      _
    // Predicated region
    $region18: #{image_retrieval_forward.3} parent=1 // pred_check
      _
    $region19: #{image_retrieval_forward.3} parent=1 // pred_check_branch
      %148 = sbr.rel (0) target = $region21
    $region20: #{image_retrieval_forward.3} parent=1 // pred_region
      %150 = vsyncadd [#allocation5], 0
      %s152 = sshll.u32 [#allocation4], 4
      %s153 = int_to_ptr.vmem [resolvable:$true] %s152
      %s154 = sshll.u32 %s4, 4
      %s155 = int_to_ptr.hbm [resolvable:$true] %s154
      %157 = dma.vmem_to_hbm [thread:$0]  %s153, 32, %s155, [#allocation5]
    $region21: #{image_retrieval_forward.3} parent=1 // pred_fallthru
      _
    // Predicated region
    $region22: #{image_retrieval_forward.3} parent=1 // pred_check
      _
    $region23: #{image_retrieval_forward.3} parent=1 // pred_check_branch
      %159 = sbr.rel (0) target = $region25
    $region24: #{image_retrieval_forward.3} parent=1 // pred_region
      %161 = dma.done [#allocation3], 32
    $region25: #{image_retrieval_forward.3} parent=1 // pred_fallthru
      _
    // Predicated region
    $region26: #{image_retrieval_forward.3} parent=1 // pred_check
      _
    $region27: #{image_retrieval_forward.3} parent=1 // pred_check_branch
      %163 = sbr.rel (0) target = $region29
    $region28: #{image_retrieval_forward.3} parent=1 // pred_region
      %165 = dma.done [#allocation5], 32
    $region29: #{image_retrieval_forward.3} parent=1 // pred_fallthru
      _
    %166 = vsyncpa [#allocation3], 1
    %167 = vsyncpa [#allocation5], 1

</llo_original>
